<compile_context>
chip_gen: v7x
topology: tpu7x:2x2x1
jax: 0.10.0
libtpu: 0.0.40
codegen_flags: <defaults>
</compile_context>

<pallas_src>
import jax
import jax.numpy as jnp
from jax.experimental import pallas as pl
from jax.experimental.pallas import tpu as pltpu


def _pick_lane_block(n_lanes, l_in, l_pad, l_s1, itemsize):
    """Largest lane-tile width (multiple of 128 dividing n_lanes) fitting a VMEM budget."""
    budget = 20 * 1024 * 1024
    for nb in (1024, 512, 256, 128):
        if n_lanes % nb == 0:
            need = 2 * (l_in + l_s1) * nb * itemsize + (2 * l_pad + l_s1) * nb * 4
            if need <= budget:
                return nb
    # n_lanes smaller than / not a multiple of 128: single full-extent lane block.
    return n_lanes


def make_moving_avg(kernel_size: int, stride: int):
    """Returns a jitted callable f(x: [B, L, C]) -> [B, L_out, C]."""
    pad = (kernel_size - 1) // 2
    inv_k = 1.0 / float(kernel_size)

    def fwd(x: jax.Array) -> jax.Array:
        B, L, C = x.shape
        L_pad = L + 2 * pad
        L_s1 = L_pad - kernel_size + 1                      # stride-1 output length
        L_out = (L_pad - kernel_size) // stride + 1
        N = B * C
        itemsize = jnp.dtype(x.dtype).itemsize
        Nb = _pick_lane_block(N, L, L_pad, L_s1, itemsize)
        num_blocks = N // Nb

        # Lane-dense relayout: [B, L, C] -> [L, B*C].  Every (batch, channel) time
        # series gets its own lane; time is the sublane axis.
        xt = jnp.transpose(x, (1, 0, 2)).reshape(L, N)

        def kernel(x_ref, o_ref, xp_ref):
            # x_ref : (L, Nb)     un-padded input tile
            # o_ref : (L_s1, Nb)  stride-1 moving average
            # xp_ref: (L_pad, Nb) f32 VMEM scratch holding the replicate-padded tile
            xv = x_ref[...].astype(jnp.float32)
            if pad > 0:
                front = jnp.broadcast_to(xv[0:1, :], (pad, Nb))
                back = jnp.broadcast_to(xv[L - 1:L, :], (pad, Nb))
                xp_ref[...] = jnp.concatenate([front, xv, back], axis=0)
            else:
                xp_ref[...] = xv
            # Unrolled shifted-window accumulation (kernel_size is a static int).
            # TODO(synk): for very large kernel_size a cumsum-difference formulation
            # would cut VPU work from O(kernel_size) to O(1) adds per output row.
            acc = xp_ref[pl.ds(0, L_s1), :]
            for k in range(1, kernel_size):
                acc = acc + xp_ref[pl.ds(k, L_s1), :]
            o_ref[...] = (acc * inv_k).astype(o_ref.dtype)

        # VMEM budget: double-buffered in/out tiles + padded scratch + temporaries.
        need = 2 * (L + L_s1) * Nb * itemsize + (2 * L_pad + L_s1) * Nb * 4
        vmem_limit = int(max(32 * 1024 * 1024, min(2 * need, 48 * 1024 * 1024)))

        y = pl.pallas_call(
            kernel,
            out_shape=jax.ShapeDtypeStruct((L_s1, N), x.dtype),
            grid_spec=pltpu.PrefetchScalarGridSpec(
                num_scalar_prefetch=0,
                grid=(num_blocks,),
                in_specs=[pl.BlockSpec((L, Nb), lambda j: (0, j))],
                out_specs=pl.BlockSpec((L_s1, Nb), lambda j: (0, j)),
                scratch_shapes=[pltpu.VMEM((L_pad, Nb), jnp.float32)],
            ),
            compiler_params=pltpu.CompilerParams(
                dimension_semantics=("parallel",),
                vmem_limit_bytes=vmem_limit,
            ),
        )(xt)

        if stride > 1:
            # Rarely used by Autoformer (series_decomp always uses stride=1):
            # subsample the stride-1 result instead of strided in-kernel loads.
            y = y[0:(L_out - 1) * stride + 1:stride, :]

        return y.reshape(L_out, B, C).transpose(1, 0, 2)

    return jax.jit(fwd)


def _reference_moving_avg(x, kernel_size, stride):
    """Pure-JAX reference mirroring the PyTorch module."""
    pad = (kernel_size - 1) // 2
    front = jnp.repeat(x[:, 0:1, :], pad, axis=1)
    end = jnp.repeat(x[:, -1:, :], pad, axis=1)
    xp = jnp.concatenate([front, x, end], axis=1)
    L_pad = xp.shape[1]
    L_out = (L_pad - kernel_size) // stride + 1
    outs = [jnp.mean(xp[:, t * stride:t * stride + kernel_size, :], axis=1)
            for t in range(L_out)]
    return jnp.stack(outs, axis=1)


if __name__ == "__main__":
    key = jax.random.PRNGKey(0)
    cases = [
        # (kernel_size, stride, B, L, C)
        (25, 1, 2, 48, 8),   # Autoformer series-decomposition style (odd k, stride 1)
        (5, 1, 2, 16, 8),    # original small test
        (4, 2, 2, 16, 3),    # even kernel + stride > 1 (previously untested paths)
    ]
    for idx, (ks, st, B, L, C) in enumerate(cases):
        key, sub = jax.random.split(key)
        x = jax.random.normal(sub, (B, L, C), dtype=jnp.float32)
        fn = make_moving_avg(ks, st)
        out = jax.block_until_ready(fn(x))
        ref = _reference_moving_avg(x, ks, st)
        assert out.shape == ref.shape, (idx, out.shape, ref.shape)
        assert jnp.allclose(out, ref, atol=1e-5, rtol=1e-5), f"mismatch vs reference in case {idx}"
    print("KERNEL_OK")
</pallas_src>

<mosaic_0001>
module attributes {stable_mosaic.version = 11 : i64} {
  func.func @kernel(%arg0: i32, %arg1: memref<48x16xf32, #tpu.memory_space<vmem>>, %arg2: memref<48x16xf32, #tpu.memory_space<vmem>>, %arg3: memref<72x16xf32, #tpu.memory_space<vmem>>) attributes {dimension_semantics = [#tpu.dimension_semantics<parallel>], iteration_bounds = array<i64: 1>, scalar_prefetch = 0 : i64, scratch_operands = 1 : i64, tpu.core_type = #tpu.core_type<tc>, window_params = [{transform_indices = @transform_0, window_bounds = array<i64: 48, 16>}, {transform_indices = @transform_1, window_bounds = array<i64: 48, 16>}]} {
    %c0 = arith.constant 0 : index
    %c0_0 = arith.constant 0 : index
    %0 = vector.load %arg1[%c0, %c0_0] : memref<48x16xf32, #tpu.memory_space<vmem>>, vector<48x16xf32>
    %1 = vector.extract_strided_slice %0 {offsets = [0, 0], sizes = [1, 16], strides = [1, 1]} : vector<48x16xf32> to vector<1x16xf32>
    %2 = vector.shape_cast %1 : vector<1x16xf32> to vector<1x16xf32>
    %3 = vector.broadcast %2 : vector<1x16xf32> to vector<12x16xf32>
    %4 = vector.extract_strided_slice %0 {offsets = [47, 0], sizes = [1, 16], strides = [1, 1]} : vector<48x16xf32> to vector<1x16xf32>
    %5 = vector.shape_cast %4 : vector<1x16xf32> to vector<1x16xf32>
    %6 = vector.broadcast %5 : vector<1x16xf32> to vector<12x16xf32>
    %7 = tpu.concatenate %3, %0, %6 in 0 : vector<12x16xf32>, vector<48x16xf32>, vector<12x16xf32> -> vector<72x16xf32>
    %c0_1 = arith.constant 0 : index
    %c0_2 = arith.constant 0 : index
    %8 = vector.load %arg3[%c0_1, %c0_2] : memref<72x16xf32, #tpu.memory_space<vmem>>, vector<72x16xf32>
    tpu.vector_store %arg3[%c0_1, %c0_2], %7 {strides = array<i32>} : memref<72x16xf32, #tpu.memory_space<vmem>>, vector<72x16xf32>,
    %c0_3 = arith.constant 0 : index
    %c0_4 = arith.constant 0 : index
    %9 = vector.load %arg3[%c0_3, %c0_4] : memref<72x16xf32, #tpu.memory_space<vmem>>, vector<48x16xf32>
    %c1 = arith.constant 1 : index
    %c0_5 = arith.constant 0 : index
    %10 = vector.load %arg3[%c1, %c0_5] : memref<72x16xf32, #tpu.memory_space<vmem>>, vector<48x16xf32>
    %11 = arith.addf %9, %10 : vector<48x16xf32>
    %c2 = arith.constant 2 : index
    %c0_6 = arith.constant 0 : index
    %12 = vector.load %arg3[%c2, %c0_6] : memref<72x16xf32, #tpu.memory_space<vmem>>, vector<48x16xf32>
    %13 = arith.addf %11, %12 : vector<48x16xf32>
    %c3 = arith.constant 3 : index
    %c0_7 = arith.constant 0 : index
    %14 = vector.load %arg3[%c3, %c0_7] : memref<72x16xf32, #tpu.memory_space<vmem>>, vector<48x16xf32>
    %15 = arith.addf %13, %14 : vector<48x16xf32>
    %c4 = arith.constant 4 : index
    %c0_8 = arith.constant 0 : index
    %16 = vector.load %arg3[%c4, %c0_8] : memref<72x16xf32, #tpu.memory_space<vmem>>, vector<48x16xf32>
    %17 = arith.addf %15, %16 : vector<48x16xf32>
    %c5 = arith.constant 5 : index
    %c0_9 = arith.constant 0 : index
    %18 = vector.load %arg3[%c5, %c0_9] : memref<72x16xf32, #tpu.memory_space<vmem>>, vector<48x16xf32>
    %19 = arith.addf %17, %18 : vector<48x16xf32>
    %c6 = arith.constant 6 : index
    %c0_10 = arith.constant 0 : index
    %20 = vector.load %arg3[%c6, %c0_10] : memref<72x16xf32, #tpu.memory_space<vmem>>, vector<48x16xf32>
    %21 = arith.addf %19, %20 : vector<48x16xf32>
    %c7 = arith.constant 7 : index
    %c0_11 = arith.constant 0 : index
    %22 = vector.load %arg3[%c7, %c0_11] : memref<72x16xf32, #tpu.memory_space<vmem>>, vector<48x16xf32>
    %23 = arith.addf %21, %22 : vector<48x16xf32>
    %c8 = arith.constant 8 : index
    %c0_12 = arith.constant 0 : index
    %24 = vector.load %arg3[%c8, %c0_12] : memref<72x16xf32, #tpu.memory_space<vmem>>, vector<48x16xf32>
    %25 = arith.addf %23, %24 : vector<48x16xf32>
    %c9 = arith.constant 9 : index
    %c0_13 = arith.constant 0 : index
    %26 = vector.load %arg3[%c9, %c0_13] : memref<72x16xf32, #tpu.memory_space<vmem>>, vector<48x16xf32>
    %27 = arith.addf %25, %26 : vector<48x16xf32>
    %c10 = arith.constant 10 : index
    %c0_14 = arith.constant 0 : index
    %28 = vector.load %arg3[%c10, %c0_14] : memref<72x16xf32, #tpu.memory_space<vmem>>, vector<48x16xf32>
    %29 = arith.addf %27, %28 : vector<48x16xf32>
    %c11 = arith.constant 11 : index
    %c0_15 = arith.constant 0 : index
    %30 = vector.load %arg3[%c11, %c0_15] : memref<72x16xf32, #tpu.memory_space<vmem>>, vector<48x16xf32>
    %31 = arith.addf %29, %30 : vector<48x16xf32>
    %c12 = arith.constant 12 : index
    %c0_16 = arith.constant 0 : index
    %32 = vector.load %arg3[%c12, %c0_16] : memref<72x16xf32, #tpu.memory_space<vmem>>, vector<48x16xf32>
    %33 = arith.addf %31, %32 : vector<48x16xf32>
    %c13 = arith.constant 13 : index
    %c0_17 = arith.constant 0 : index
    %34 = vector.load %arg3[%c13, %c0_17] : memref<72x16xf32, #tpu.memory_space<vmem>>, vector<48x16xf32>
    %35 = arith.addf %33, %34 : vector<48x16xf32>
    %c14 = arith.constant 14 : index
    %c0_18 = arith.constant 0 : index
    %36 = vector.load %arg3[%c14, %c0_18] : memref<72x16xf32, #tpu.memory_space<vmem>>, vector<48x16xf32>
    %37 = arith.addf %35, %36 : vector<48x16xf32>
    %c15 = arith.constant 15 : index
    %c0_19 = arith.constant 0 : index
    %38 = vector.load %arg3[%c15, %c0_19] : memref<72x16xf32, #tpu.memory_space<vmem>>, vector<48x16xf32>
    %39 = arith.addf %37, %38 : vector<48x16xf32>
    %c16 = arith.constant 16 : index
    %c0_20 = arith.constant 0 : index
    %40 = vector.load %arg3[%c16, %c0_20] : memref<72x16xf32, #tpu.memory_space<vmem>>, vector<48x16xf32>
    %41 = arith.addf %39, %40 : vector<48x16xf32>
    %c17 = arith.constant 17 : index
    %c0_21 = arith.constant 0 : index
    %42 = vector.load %arg3[%c17, %c0_21] : memref<72x16xf32, #tpu.memory_space<vmem>>, vector<48x16xf32>
    %43 = arith.addf %41, %42 : vector<48x16xf32>
    %c18 = arith.constant 18 : index
    %c0_22 = arith.constant 0 : index
    %44 = vector.load %arg3[%c18, %c0_22] : memref<72x16xf32, #tpu.memory_space<vmem>>, vector<48x16xf32>
    %45 = arith.addf %43, %44 : vector<48x16xf32>
    %c19 = arith.constant 19 : index
    %c0_23 = arith.constant 0 : index
    %46 = vector.load %arg3[%c19, %c0_23] : memref<72x16xf32, #tpu.memory_space<vmem>>, vector<48x16xf32>
    %47 = arith.addf %45, %46 : vector<48x16xf32>
    %c20 = arith.constant 20 : index
    %c0_24 = arith.constant 0 : index
    %48 = vector.load %arg3[%c20, %c0_24] : memref<72x16xf32, #tpu.memory_space<vmem>>, vector<48x16xf32>
    %49 = arith.addf %47, %48 : vector<48x16xf32>
    %c21 = arith.constant 21 : index
    %c0_25 = arith.constant 0 : index
    %50 = vector.load %arg3[%c21, %c0_25] : memref<72x16xf32, #tpu.memory_space<vmem>>, vector<48x16xf32>
    %51 = arith.addf %49, %50 : vector<48x16xf32>
    %c22 = arith.constant 22 : index
    %c0_26 = arith.constant 0 : index
    %52 = vector.load %arg3[%c22, %c0_26] : memref<72x16xf32, #tpu.memory_space<vmem>>, vector<48x16xf32>
    %53 = arith.addf %51, %52 : vector<48x16xf32>
    %c23 = arith.constant 23 : index
    %c0_27 = arith.constant 0 : index
    %54 = vector.load %arg3[%c23, %c0_27] : memref<72x16xf32, #tpu.memory_space<vmem>>, vector<48x16xf32>
    %55 = arith.addf %53, %54 : vector<48x16xf32>
    %c24 = arith.constant 24 : index
    %c0_28 = arith.constant 0 : index
    %56 = vector.load %arg3[%c24, %c0_28] : memref<72x16xf32, #tpu.memory_space<vmem>>, vector<48x16xf32>
    %57 = arith.addf %55, %56 : vector<48x16xf32>
    %cst = arith.constant 4.000000e-02 : f32
    %58 = vector.broadcast %cst : f32 to vector<48x16xf32>
    %59 = arith.mulf %57, %58 : vector<48x16xf32>
    %c0_29 = arith.constant 0 : index
    %c0_30 = arith.constant 0 : index
    %60 = vector.load %arg2[%c0_29, %c0_30] : memref<48x16xf32, #tpu.memory_space<vmem>>, vector<48x16xf32>
    tpu.vector_store %arg2[%c0_29, %c0_30], %59 {strides = array<i32>} : memref<48x16xf32, #tpu.memory_space<vmem>>, vector<48x16xf32>,
    return
  }
  func.func @transform_0(%arg0: i32) -> (i32, i32) {
    %c0_i32 = arith.constant 0 : i32
    %c0_i32_0 = arith.constant 0 : i32
    return %c0_i32, %arg0 : i32, i32
  }
  func.func @transform_1(%arg0: i32) -> (i32, i32) {
    %c0_i32 = arith.constant 0 : i32
    %c0_i32_0 = arith.constant 0 : i32
    return %c0_i32, %arg0 : i32, i32
  }
}

</mosaic_0001>

<llo_original>
// kernel: fwd.1
$region0: #{fwd.1}
  #allocation0 [shape = 'u32[]', space=smem, size = 0x4, offset = 0x4, fixed_abs, tag = 'smem constant byte address 0x4 - core index']
  #allocation1 [shape = 'u32[144,128]{1,0:T(1,128)}', space=vmem, size = 0x12000, scoped, tag = 'internal scratch']
  #allocation2 [shape = 'f32[72,16]{1,0:T(8,128)}', space=vmem, size = 0x9000, scoped, tag = 'scratch operand']
  %s0 = inlined_call_operand.vmem [shape: f32[48,16], index: 0, kind: input, shape index: {}]
  %s1 = inlined_call_operand.vmem [shape: f32[48,16], index: 1, kind: output, shape index: {}]
  %s2 = sld [smem:[#allocation0]]
  $region14: #{fwd.1} parent=0
    _
  %s4 = ssub.s32 1, %s2
  %s5 = scalar_select 0, %s4, %s2
  // Predicated region
  $region2: #{fwd.1} parent=0 // pred_check
    _
  $region3: #{fwd.1} parent=0 // pred_check_branch
    %7 = sbr.rel (0) target = $region5
  $region4: #{fwd.1} parent=0 // pred_region
    _
  $region5: #{fwd.1} parent=0 // pred_fallthru
    _
  %v8 = vld [vmem:[%s0] sm:$0xff]
  %v9 = vld [vmem:[%s0 + $0x8] sm:$0xff]
  %v10 = vld [vmem:[%s0 + $0x10] sm:$0xff]
  %v11 = vld [vmem:[%s0 + $0x18] sm:$0xff]
  %v12 = vld [vmem:[%s0 + $0x20] sm:$0xff]
  %v13 = vld [vmem:[%s0 + $0x28] sm:$0xff]
  %v14 = vlaneseq
  %v15 = vshrl.u32 %v14, 7
  %v16 = vsub.s32 0, %v15
  %v17 = vrot.slane %v8, %v16
  %v18 = vlaneseq
  %v19 = vshrl.u32 %v18, 7
  %v20 = vsub.s32 7, %v19
  %v21 = vrot.slane %v13, %v20
  %vm28 = vcmask 1043456
  %v29 = vrot.slane %v8, 4
  %v30 = vrot.slane %v9, 4
  %v31 = vsel %vm28, %v29, %v30
  %v32 = vrot.slane %v10, 4
  %v33 = vsel %vm28, %v30, %v32
  %v34 = vrot.slane %v11, 4
  %v35 = vsel %vm28, %v32, %v34
  %v36 = vrot.slane %v12, 4
  %v37 = vsel %vm28, %v34, %v36
  %v38 = vrot.slane %v13, 4
  %v39 = vsel %vm28, %v36, %v38
  %v47 = vsel %vm28, %v17, %v29
  %v48 = vsel %vm28, %v38, %v21
  %vm49 = vcmask 130048
  %50 = vst.msk [vmem:[#allocation2] sm:$0xff] %vm49, %v17
  %51 = vst.msk [vmem:[#allocation2 + $0x8] sm:$0xff] %vm49, %v47
  %52 = vst.msk [vmem:[#allocation2 + $0x10] sm:$0xff] %vm49, %v31
  %53 = vst.msk [vmem:[#allocation2 + $0x18] sm:$0xff] %vm49, %v33
  %54 = vst.msk [vmem:[#allocation2 + $0x20] sm:$0xff] %vm49, %v35
  %55 = vst.msk [vmem:[#allocation2 + $0x28] sm:$0xff] %vm49, %v37
  %56 = vst.msk [vmem:[#allocation2 + $0x30] sm:$0xff] %vm49, %v39
  %57 = vst.msk [vmem:[#allocation2 + $0x38] sm:$0xff] %vm49, %v48
  %58 = vst.msk [vmem:[#allocation2 + $0x40] sm:$0xff] %vm49, %v21
  %v59 = vld [vmem:[#allocation2] sm:$0xff]
  %v60 = vld [vmem:[#allocation2 + $0x8] sm:$0xff]
  %v61 = vld [vmem:[#allocation2 + $0x10] sm:$0xff]
  %v62 = vld [vmem:[#allocation2 + $0x18] sm:$0xff]
  %v63 = vld [vmem:[#allocation2 + $0x20] sm:$0xff]
  %v64 = vld [vmem:[#allocation2 + $0x28] sm:$0xff]
  %v65 = vld [vmem:[#allocation2 + $0x1] sm:$0xff]
  %v66 = vld [vmem:[#allocation2 + $0x9] sm:$0xff]
  %v67 = vld [vmem:[#allocation2 + $0x11] sm:$0xff]
  %v68 = vld [vmem:[#allocation2 + $0x19] sm:$0xff]
  %v69 = vld [vmem:[#allocation2 + $0x21] sm:$0xff]
  %v70 = vld [vmem:[#allocation2 + $0x29] sm:$0xff]
  %v71 = vadd.f32 %v59, %v65
  %v72 = vadd.f32 %v60, %v66
  %v73 = vadd.f32 %v61, %v67
  %v74 = vadd.f32 %v62, %v68
  %v75 = vadd.f32 %v63, %v69
  %v76 = vadd.f32 %v64, %v70
  %v77 = vld [vmem:[#allocation2 + $0x2] sm:$0xff]
  %v78 = vld [vmem:[#allocation2 + $0xa] sm:$0xff]
  %v79 = vld [vmem:[#allocation2 + $0x12] sm:$0xff]
  %v80 = vld [vmem:[#allocation2 + $0x1a] sm:$0xff]
  %v81 = vld [vmem:[#allocation2 + $0x22] sm:$0xff]
  %v82 = vld [vmem:[#allocation2 + $0x2a] sm:$0xff]
  %v83 = vadd.f32 %v71, %v77
  %v84 = vadd.f32 %v72, %v78
  %v85 = vadd.f32 %v73, %v79
  %v86 = vadd.f32 %v74, %v80
  %v87 = vadd.f32 %v75, %v81
  %v88 = vadd.f32 %v76, %v82
  %v89 = vld [vmem:[#allocation2 + $0x3] sm:$0xff]
  %v90 = vld [vmem:[#allocation2 + $0xb] sm:$0xff]
  %v91 = vld [vmem:[#allocation2 + $0x13] sm:$0xff]
  %v92 = vld [vmem:[#allocation2 + $0x1b] sm:$0xff]
  %v93 = vld [vmem:[#allocation2 + $0x23] sm:$0xff]
  %v94 = vld [vmem:[#allocation2 + $0x2b] sm:$0xff]
  %v95 = vadd.f32 %v83, %v89
  %v96 = vadd.f32 %v84, %v90
  %v97 = vadd.f32 %v85, %v91
  %v98 = vadd.f32 %v86, %v92
  %v99 = vadd.f32 %v87, %v93
  %v100 = vadd.f32 %v88, %v94
  %v101 = vld [vmem:[#allocation2 + $0x4] sm:$0xff]
  %v102 = vld [vmem:[#allocation2 + $0xc] sm:$0xff]
  %v103 = vld [vmem:[#allocation2 + $0x14] sm:$0xff]
  %v104 = vld [vmem:[#allocation2 + $0x1c] sm:$0xff]
  %v105 = vld [vmem:[#allocation2 + $0x24] sm:$0xff]
  %v106 = vld [vmem:[#allocation2 + $0x2c] sm:$0xff]
  %v107 = vadd.f32 %v95, %v101
  %v108 = vadd.f32 %v96, %v102
  %v109 = vadd.f32 %v97, %v103
  %v110 = vadd.f32 %v98, %v104
  %v111 = vadd.f32 %v99, %v105
  %v112 = vadd.f32 %v100, %v106
  %v113 = vld [vmem:[#allocation2 + $0x5] sm:$0xff]
  %v114 = vld [vmem:[#allocation2 + $0xd] sm:$0xff]
  %v115 = vld [vmem:[#allocation2 + $0x15] sm:$0xff]
  %v116 = vld [vmem:[#allocation2 + $0x1d] sm:$0xff]
  %v117 = vld [vmem:[#allocation2 + $0x25] sm:$0xff]
  %v118 = vld [vmem:[#allocation2 + $0x2d] sm:$0xff]
  %v119 = vadd.f32 %v107, %v113
  %v120 = vadd.f32 %v108, %v114
  %v121 = vadd.f32 %v109, %v115
  %v122 = vadd.f32 %v110, %v116
  %v123 = vadd.f32 %v111, %v117
  %v124 = vadd.f32 %v112, %v118
  %v125 = vld [vmem:[#allocation2 + $0x6] sm:$0xff]
  %v126 = vld [vmem:[#allocation2 + $0xe] sm:$0xff]
  %v127 = vld [vmem:[#allocation2 + $0x16] sm:$0xff]
  %v128 = vld [vmem:[#allocation2 + $0x1e] sm:$0xff]
  %v129 = vld [vmem:[#allocation2 + $0x26] sm:$0xff]
  %v130 = vld [vmem:[#allocation2 + $0x2e] sm:$0xff]
  %v131 = vadd.f32 %v119, %v125
  %v132 = vadd.f32 %v120, %v126
  %v133 = vadd.f32 %v121, %v127
  %v134 = vadd.f32 %v122, %v128
  %v135 = vadd.f32 %v123, %v129
  %v136 = vadd.f32 %v124, %v130
  %v137 = vld [vmem:[#allocation2 + $0x7] sm:$0xff]
  %v138 = vld [vmem:[#allocation2 + $0xf] sm:$0xff]
  %v139 = vld [vmem:[#allocation2 + $0x17] sm:$0xff]
  %v140 = vld [vmem:[#allocation2 + $0x1f] sm:$0xff]
  %v141 = vld [vmem:[#allocation2 + $0x27] sm:$0xff]
  %v142 = vld [vmem:[#allocation2 + $0x2f] sm:$0xff]
  %v143 = vadd.f32 %v131, %v137
  %v144 = vadd.f32 %v132, %v138
  %v145 = vadd.f32 %v133, %v139
  %v146 = vadd.f32 %v134, %v140
  %v147 = vadd.f32 %v135, %v141
  %v148 = vadd.f32 %v136, %v142
  %v149 = vld [vmem:[#allocation2 + $0x30] sm:$0xff]
  %v150 = vadd.f32 %v143, %v60
  %v151 = vadd.f32 %v144, %v61
  %v152 = vadd.f32 %v145, %v62
  %v153 = vadd.f32 %v146, %v63
  %v154 = vadd.f32 %v147, %v64
  %v155 = vadd.f32 %v148, %v149
  %v156 = vld [vmem:[#allocation2 + $0x31] sm:$0xff]
  %v157 = vadd.f32 %v150, %v66
  %v158 = vadd.f32 %v151, %v67
  %v159 = vadd.f32 %v152, %v68
  %v160 = vadd.f32 %v153, %v69
  %v161 = vadd.f32 %v154, %v70
  %v162 = vadd.f32 %v155, %v156
  %v163 = vld [vmem:[#allocation2 + $0x32] sm:$0xff]
  %v164 = vadd.f32 %v157, %v78
  %v165 = vadd.f32 %v158, %v79
  %v166 = vadd.f32 %v159, %v80
  %v167 = vadd.f32 %v160, %v81
  %v168 = vadd.f32 %v161, %v82
  %v169 = vadd.f32 %v162, %v163
  %v170 = vld [vmem:[#allocation2 + $0x33] sm:$0xff]
  %v171 = vadd.f32 %v164, %v90
  %v172 = vadd.f32 %v165, %v91
  %v173 = vadd.f32 %v166, %v92
  %v174 = vadd.f32 %v167, %v93
  %v175 = vadd.f32 %v168, %v94
  %v176 = vadd.f32 %v169, %v170
  %v177 = vld [vmem:[#allocation2 + $0x34] sm:$0xff]
  %v178 = vadd.f32 %v171, %v102
  %v179 = vadd.f32 %v172, %v103
  %v180 = vadd.f32 %v173, %v104
  %v181 = vadd.f32 %v174, %v105
  %v182 = vadd.f32 %v175, %v106
  %v183 = vadd.f32 %v176, %v177
  %v184 = vld [vmem:[#allocation2 + $0x35] sm:$0xff]
  %v185 = vadd.f32 %v178, %v114
  %v186 = vadd.f32 %v179, %v115
  %v187 = vadd.f32 %v180, %v116
  %v188 = vadd.f32 %v181, %v117
  %v189 = vadd.f32 %v182, %v118
  %v190 = vadd.f32 %v183, %v184
  %v191 = vld [vmem:[#allocation2 + $0x36] sm:$0xff]
  %v192 = vadd.f32 %v185, %v126
  %v193 = vadd.f32 %v186, %v127
  %v194 = vadd.f32 %v187, %v128
  %v195 = vadd.f32 %v188, %v129
  %v196 = vadd.f32 %v189, %v130
  %v197 = vadd.f32 %v190, %v191
  %v198 = vld [vmem:[#allocation2 + $0x37] sm:$0xff]
  %v199 = vadd.f32 %v192, %v138
  %v200 = vadd.f32 %v193, %v139
  %v201 = vadd.f32 %v194, %v140
  %v202 = vadd.f32 %v195, %v141
  %v203 = vadd.f32 %v196, %v142
  %v204 = vadd.f32 %v197, %v198
  %v205 = vld [vmem:[#allocation2 + $0x38] sm:$0xff]
  %v206 = vadd.f32 %v199, %v61
  %v207 = vadd.f32 %v200, %v62
  %v208 = vadd.f32 %v201, %v63
  %v209 = vadd.f32 %v202, %v64
  %v210 = vadd.f32 %v203, %v149
  %v211 = vadd.f32 %v204, %v205
  %v212 = vld [vmem:[#allocation2 + $0x39] sm:$0xff]
  %v213 = vadd.f32 %v206, %v67
  %v214 = vadd.f32 %v207, %v68
  %v215 = vadd.f32 %v208, %v69
  %v216 = vadd.f32 %v209, %v70
  %v217 = vadd.f32 %v210, %v156
  %v218 = vadd.f32 %v211, %v212
  %v219 = vld [vmem:[#allocation2 + $0x3a] sm:$0xff]
  %v220 = vadd.f32 %v213, %v79
  %v221 = vadd.f32 %v214, %v80
  %v222 = vadd.f32 %v215, %v81
  %v223 = vadd.f32 %v216, %v82
  %v224 = vadd.f32 %v217, %v163
  %v225 = vadd.f32 %v218, %v219
  %v226 = vld [vmem:[#allocation2 + $0x3b] sm:$0xff]
  %v227 = vadd.f32 %v220, %v91
  %v228 = vadd.f32 %v221, %v92
  %v229 = vadd.f32 %v222, %v93
  %v230 = vadd.f32 %v223, %v94
  %v231 = vadd.f32 %v224, %v170
  %v232 = vadd.f32 %v225, %v226
  %v233 = vld [vmem:[#allocation2 + $0x3c] sm:$0xff]
  %v234 = vadd.f32 %v227, %v103
  %v235 = vadd.f32 %v228, %v104
  %v236 = vadd.f32 %v229, %v105
  %v237 = vadd.f32 %v230, %v106
  %v238 = vadd.f32 %v231, %v177
  %v239 = vadd.f32 %v232, %v233
  %v240 = vld [vmem:[#allocation2 + $0x3d] sm:$0xff]
  %v241 = vadd.f32 %v234, %v115
  %v242 = vadd.f32 %v235, %v116
  %v243 = vadd.f32 %v236, %v117
  %v244 = vadd.f32 %v237, %v118
  %v245 = vadd.f32 %v238, %v184
  %v246 = vadd.f32 %v239, %v240
  %v247 = vld [vmem:[#allocation2 + $0x3e] sm:$0xff]
  %v248 = vadd.f32 %v241, %v127
  %v249 = vadd.f32 %v242, %v128
  %v250 = vadd.f32 %v243, %v129
  %v251 = vadd.f32 %v244, %v130
  %v252 = vadd.f32 %v245, %v191
  %v253 = vadd.f32 %v246, %v247
  %v254 = vld [vmem:[#allocation2 + $0x3f] sm:$0xff]
  %v255 = vadd.f32 %v248, %v139
  %v256 = vadd.f32 %v249, %v140
  %v257 = vadd.f32 %v250, %v141
  %v258 = vadd.f32 %v251, %v142
  %v259 = vadd.f32 %v252, %v198
  %v260 = vadd.f32 %v253, %v254
  %v261 = vld [vmem:[#allocation2 + $0x40] sm:$0xff]
  %v262 = vadd.f32 %v255, %v62
  %v263 = vadd.f32 %v256, %v63
  %v264 = vadd.f32 %v257, %v64
  %v265 = vadd.f32 %v258, %v149
  %v266 = vadd.f32 %v259, %v205
  %v267 = vadd.f32 %v260, %v261
  %v268 = vmul.f32 %v262, 0.04
  %v269 = vmul.f32 %v263, 0.04
  %v270 = vmul.f32 %v264, 0.04
  %v271 = vmul.f32 %v265, 0.04
  %v272 = vmul.f32 %v266, 0.04
  %v273 = vmul.f32 %v267, 0.04
  %274 = vst.msk [vmem:[%s1] sm:$0xff] %vm49, %v268
  %275 = vst.msk [vmem:[%s1 + $0x8] sm:$0xff] %vm49, %v269
  %276 = vst.msk [vmem:[%s1 + $0x10] sm:$0xff] %vm49, %v270
  %277 = vst.msk [vmem:[%s1 + $0x18] sm:$0xff] %vm49, %v271
  %278 = vst.msk [vmem:[%s1 + $0x20] sm:$0xff] %vm49, %v272
  %279 = vst.msk [vmem:[%s1 + $0x28] sm:$0xff] %vm49, %v273
  // Predicated region
  $region6: #{fwd.1} parent=0 // pred_check
    _
  $region7: #{fwd.1} parent=0 // pred_check_branch
    %281 = sbr.rel (0) target = $region9
  $region8: #{fwd.1} parent=0 // pred_region
    _
  $region9: #{fwd.1} parent=0 // pred_fallthru
    _
  // Predicated region
  $region10: #{fwd.1} parent=0 // pred_check
    _
  $region11: #{fwd.1} parent=0 // pred_check_branch
    %283 = sbr.rel (0) target = $region13
  $region12: #{fwd.1} parent=0 // pred_region
    _
  $region13: #{fwd.1} parent=0 // pred_fallthru
    _

</llo_original>
